<compile_context>
chip_gen: v5e
topology: v5e:2x2
jax: 0.10.0
libtpu: 0.0.40
codegen_flags: <defaults>
</compile_context>

<pallas_src>
import math
import jax
import jax.numpy as jnp
from jax.experimental import pallas as pl
from jax.experimental.pallas import tpu as pltpu


def _round_up(x, m):
    return ((x + m - 1) // m) * m


def gml_kernel(x1_ref, x2_ref, w1_ref, w2_ref, ws1_ref, ws2_ref, o_ref):
    # Two lean MXU matmuls (no zero-padded block-diagonal waste).
    h1 = jnp.tanh(jnp.dot(x1_ref[...], w1_ref[...],
                          preferred_element_type=jnp.float32))
    h2 = jnp.tanh(jnp.dot(x2_ref[...], w2_ref[...],
                          preferred_element_type=jnp.float32))
    # Gate logit on VPU (broadcast mul) + XLU (lane reduce); padded columns
    # contribute 0 because ws is zero there.
    z_logit = (jnp.sum(h1 * ws1_ref[...], axis=-1, keepdims=True)
               + jnp.sum(h2 * ws2_ref[...], axis=-1, keepdims=True))  # (bm, 1)
    z = jax.nn.sigmoid(z_logit)
    # z*h1 + (1-z)*h2  ==  h2 + z*(h1 - h2)   (saves one VPU multiply)
    o_ref[...] = (h2 + z * (h1 - h2)).astype(o_ref.dtype)


def gated_multimodal_layer(x1, x2, w1, w2, w_sigmoid, *, bm=512):
    """Pallas implementation of GatedMultimodalLayer.forward.

    x1: (B, size_in1), x2: (B, size_in2)
    w1: (size_out, size_in1), w2: (size_out, size_in2)   (PyTorch layout)
    w_sigmoid: (2*size_out,)
    returns: (B, size_out)
    """
    B, size_in1 = x1.shape
    B2, size_in2 = x2.shape
    assert B == B2, "x1/x2 batch mismatch"
    size_out = w1.shape[0]
    assert w1.shape == (size_out, size_in1)
    assert w2.shape == (size_out, size_in2)
    assert w_sigmoid.shape == (2 * size_out,)

    compute_dtype = jnp.float32
    out_dtype = x1.dtype

    # ---- tiling / padding derived sizes -------------------------------------
    No = _round_up(size_out, 128)                     # lane-dense output width
    K1p = _round_up(size_in1, 128)                    # padded contraction dims
    K2p = _round_up(size_in2, 128)
    bm_eff = min(_round_up(bm, 8), _round_up(B, 8))   # batch tile (mult. of 8)
    Bp = _round_up(B, bm_eff)                         # padded batch

    # ---- wrapper glue: zero-padded inputs / weights (math-neutral) ----------
    x1p = jnp.pad(x1.astype(compute_dtype), ((0, Bp - B), (0, K1p - size_in1)))
    x2p = jnp.pad(x2.astype(compute_dtype), ((0, Bp - B), (0, K2p - size_in2)))

    w1p = jnp.pad(w1.T.astype(compute_dtype),
                  ((0, K1p - size_in1), (0, No - size_out)))      # (K1p, No)
    w2p = jnp.pad(w2.T.astype(compute_dtype),
                  ((0, K2p - size_in2), (0, No - size_out)))      # (K2p, No)

    ws1 = jnp.pad(w_sigmoid[:size_out].astype(compute_dtype),
                  (0, No - size_out)).reshape(1, No)              # (1, No)
    ws2 = jnp.pad(w_sigmoid[size_out:].astype(compute_dtype),
                  (0, No - size_out)).reshape(1, No)              # (1, No)

    grid = (Bp // bm_eff,)

    # ---- VMEM budget: double-buffered x/out tiles + resident weights + h ----
    itemsize = 4
    need = itemsize * (2 * bm_eff * (K1p + K2p)       # x tiles, double-buffered
                       + 2 * bm_eff * No              # out tile, double-buffered
                       + (K1p + K2p) * No + 2 * No    # weights (resident)
                       + 2 * bm_eff * No)             # h1/h2 f32 intermediates
    vmem_limit = int(min(max(2 * need, 32 * 1024 * 1024), 64 * 1024 * 1024))

    out_padded = pl.pallas_call(
        gml_kernel,
        out_shape=jax.ShapeDtypeStruct((Bp, No), out_dtype),
        grid_spec=pltpu.PrefetchScalarGridSpec(
            num_scalar_prefetch=0,
            grid=grid,
            in_specs=[
                pl.BlockSpec((bm_eff, K1p), lambda i: (i, 0)),
                pl.BlockSpec((bm_eff, K2p), lambda i: (i, 0)),
                pl.BlockSpec((K1p, No), lambda i: (0, 0)),
                pl.BlockSpec((K2p, No), lambda i: (0, 0)),
                pl.BlockSpec((1, No), lambda i: (0, 0)),
                pl.BlockSpec((1, No), lambda i: (0, 0)),
            ],
            out_specs=pl.BlockSpec((bm_eff, No), lambda i: (i, 0)),
        ),
        compiler_params=pltpu.CompilerParams(
            dimension_semantics=("parallel",),
            vmem_limit_bytes=vmem_limit),
    )(x1p, x2p, w1p, w2p, ws1, ws2)

    return out_padded[:B, :size_out]


def _kaiming_uniform(key, fan_out, fan_in, a=math.sqrt(5)):
    # Matches nn.init.kaiming_uniform_(tensor, a=sqrt(5)) for a (fan_out, fan_in)
    # weight: gain = sqrt(2 / (1 + a^2)), bound = gain * sqrt(3 / fan_in).
    gain = math.sqrt(2.0 / (1.0 + a * a))
    bound = gain * math.sqrt(3.0 / fan_in)
    return jax.random.uniform(key, (fan_out, fan_in), jnp.float32,
                              minval=-bound, maxval=bound)


def reference(x1, x2, w1, w2, w_sigmoid):
    h1 = jnp.tanh(x1 @ w1.T)
    h2 = jnp.tanh(x2 @ w2.T)
    x = jnp.concatenate([h1, h2], axis=1)
    z = jax.nn.sigmoid(x @ w_sigmoid)
    return z[:, None] * h1 + (1.0 - z)[:, None] * h2


if __name__ == "__main__":
    B, size_in1, size_in2, size_out = 8, 32, 48, 64

    key = jax.random.PRNGKey(0)
    k1, k2, k3, k4, k5 = jax.random.split(key, 5)

    x1 = jax.random.normal(k1, (B, size_in1), jnp.float32)
    x2 = jax.random.normal(k2, (B, size_in2), jnp.float32)

    w1 = _kaiming_uniform(k3, size_out, size_in1)
    w2 = _kaiming_uniform(k4, size_out, size_in2)
    # weight_sigmoid is an uninitialized torch.Tensor in the module; init
    # deterministically with a small uniform here.
    w_sigmoid = jax.random.uniform(k5, (2 * size_out,), jnp.float32,
                                   minval=-0.1, maxval=0.1)

    out = gated_multimodal_layer(x1, x2, w1, w2, w_sigmoid)
    out = jax.block_until_ready(out)

    ref = reference(x1, x2, w1, w2, w_sigmoid)
    assert out.shape == (B, size_out)
    assert jnp.allclose(out, ref, atol=1e-5, rtol=1e-5), "mismatch vs reference"
    print("KERNEL_OK")
</pallas_src>

<mosaic_0001>
module attributes {stable_mosaic.version = 11 : i64} {
  func.func @gml_kernel(%arg0: i32, %arg1: memref<8x128xf32, #tpu.memory_space<vmem>>, %arg2: memref<8x128xf32, #tpu.memory_space<vmem>>, %arg3: memref<128x128xf32, #tpu.memory_space<vmem>>, %arg4: memref<128x128xf32, #tpu.memory_space<vmem>>, %arg5: memref<1x128xf32, #tpu.memory_space<vmem>>, %arg6: memref<1x128xf32, #tpu.memory_space<vmem>>, %arg7: memref<8x128xf32, #tpu.memory_space<vmem>>) attributes {dimension_semantics = [#tpu.dimension_semantics<parallel>], iteration_bounds = array<i64: 1>, scalar_prefetch = 0 : i64, scratch_operands = 0 : i64, tpu.core_type = #tpu.core_type<tc>, window_params = [{transform_indices = @transform_0, window_bounds = array<i64: 8, 128>}, {transform_indices = @transform_1, window_bounds = array<i64: 8, 128>}, {pipeline_mode = #tpu.pipeline_mode<synchronous>, transform_indices = @transform_2, window_bounds = array<i64: 128, 128>}, {pipeline_mode = #tpu.pipeline_mode<synchronous>, transform_indices = @transform_3, window_bounds = array<i64: 128, 128>}, {pipeline_mode = #tpu.pipeline_mode<synchronous>, transform_indices = @transform_4, window_bounds = array<i64: 1, 128>}, {pipeline_mode = #tpu.pipeline_mode<synchronous>, transform_indices = @transform_5, window_bounds = array<i64: 1, 128>}, {transform_indices = @transform_6, window_bounds = array<i64: 8, 128>}]} {
    %c0 = arith.constant 0 : index
    %c0_0 = arith.constant 0 : index
    %0 = vector.load %arg1[%c0, %c0_0] : memref<8x128xf32, #tpu.memory_space<vmem>>, vector<8x128xf32>
    %c0_1 = arith.constant 0 : index
    %c0_2 = arith.constant 0 : index
    %1 = vector.load %arg3[%c0_1, %c0_2] : memref<128x128xf32, #tpu.memory_space<vmem>>, vector<128x128xf32>
    %cst = arith.constant dense<0.000000e+00> : vector<8x128xf32>
    %2 = tpu.matmul %0, %1, %cst {dimension_numbers = #tpu.dot_dimension_numbers<[1], [0], [0], [1], [0, 0, 1, 1], [], []>} : vector<8x128xf32>, vector<128x128xf32>, vector<8x128xf32> -> vector<8x128xf32>
    %3 = math.tanh %2 : vector<8x128xf32>
    %c0_3 = arith.constant 0 : index
    %c0_4 = arith.constant 0 : index
    %4 = vector.load %arg2[%c0_3, %c0_4] : memref<8x128xf32, #tpu.memory_space<vmem>>, vector<8x128xf32>
    %c0_5 = arith.constant 0 : index
    %c0_6 = arith.constant 0 : index
    %5 = vector.load %arg4[%c0_5, %c0_6] : memref<128x128xf32, #tpu.memory_space<vmem>>, vector<128x128xf32>
    %cst_7 = arith.constant dense<0.000000e+00> : vector<8x128xf32>
    %6 = tpu.matmul %4, %5, %cst_7 {dimension_numbers = #tpu.dot_dimension_numbers<[1], [0], [0], [1], [0, 0, 1, 1], [], []>} : vector<8x128xf32>, vector<128x128xf32>, vector<8x128xf32> -> vector<8x128xf32>
    %7 = math.tanh %6 : vector<8x128xf32>
    %c0_8 = arith.constant 0 : index
    %c0_9 = arith.constant 0 : index
    %8 = vector.load %arg5[%c0_8, %c0_9] : memref<1x128xf32, #tpu.memory_space<vmem>>, vector<1x128xf32>
    %9 = vector.broadcast %8 : vector<1x128xf32> to vector<8x128xf32>
    %10 = arith.mulf %3, %9 : vector<8x128xf32>
    %cst_10 = arith.constant dense<0.000000e+00> : vector<8xf32>
    %11 = vector.multi_reduction <add>, %10, %cst_10 [1] : vector<8x128xf32> to vector<8xf32>
    %12 = vector.shape_cast %11 : vector<8xf32> to vector<8x1xf32>
    %c0_11 = arith.constant 0 : index
    %c0_12 = arith.constant 0 : index
    %13 = vector.load %arg6[%c0_11, %c0_12] : memref<1x128xf32, #tpu.memory_space<vmem>>, vector<1x128xf32>
    %14 = vector.broadcast %13 : vector<1x128xf32> to vector<8x128xf32>
    %15 = arith.mulf %7, %14 : vector<8x128xf32>
    %cst_13 = arith.constant dense<0.000000e+00> : vector<8xf32>
    %16 = vector.multi_reduction <add>, %15, %cst_13 [1] : vector<8x128xf32> to vector<8xf32>
    %17 = vector.shape_cast %16 : vector<8xf32> to vector<8x1xf32>
    %18 = arith.addf %12, %17 : vector<8x1xf32>
    %19 = arith.negf %18 : vector<8x1xf32>
    %20 = math.exp %19 : vector<8x1xf32>
    %cst_14 = arith.constant 1.000000e+00 : f32
    %21 = vector.broadcast %cst_14 : f32 to vector<8x1xf32>
    %22 = arith.addf %21, %20 : vector<8x1xf32>
    %23 = arith.divf %21, %22 : vector<8x1xf32>
    %24 = arith.subf %3, %7 : vector<8x128xf32>
    %25 = vector.broadcast %23 : vector<8x1xf32> to vector<8x128xf32>
    %26 = arith.mulf %25, %24 : vector<8x128xf32>
    %27 = arith.addf %7, %26 : vector<8x128xf32>
    %c0_15 = arith.constant 0 : index
    %c0_16 = arith.constant 0 : index
    %28 = vector.load %arg7[%c0_15, %c0_16] : memref<8x128xf32, #tpu.memory_space<vmem>>, vector<8x128xf32>
    tpu.vector_store %arg7[%c0_15, %c0_16], %27 {strides = array<i32>} : memref<8x128xf32, #tpu.memory_space<vmem>>, vector<8x128xf32>,
    return
  }
  func.func @transform_0(%arg0: i32) -> (i32, i32) {
    %c0_i32 = arith.constant 0 : i32
    %c0_i32_0 = arith.constant 0 : i32
    return %arg0, %c0_i32 : i32, i32
  }
  func.func @transform_1(%arg0: i32) -> (i32, i32) {
    %c0_i32 = arith.constant 0 : i32
    %c0_i32_0 = arith.constant 0 : i32
    return %arg0, %c0_i32 : i32, i32
  }
  func.func @transform_2(%arg0: i32) -> (i32, i32) {
    %c0_i32 = arith.constant 0 : i32
    %c0_i32_0 = arith.constant 0 : i32
    %c0_i32_1 = arith.constant 0 : i32
    return %c0_i32, %c0_i32_0 : i32, i32
  }
  func.func @transform_3(%arg0: i32) -> (i32, i32) {
    %c0_i32 = arith.constant 0 : i32
    %c0_i32_0 = arith.constant 0 : i32
    %c0_i32_1 = arith.constant 0 : i32
    return %c0_i32, %c0_i32_0 : i32, i32
  }
  func.func @transform_4(%arg0: i32) -> (i32, i32) {
    %c0_i32 = arith.constant 0 : i32
    %c0_i32_0 = arith.constant 0 : i32
    %c0_i32_1 = arith.constant 0 : i32
    return %c0_i32, %c0_i32_0 : i32, i32
  }
  func.func @transform_5(%arg0: i32) -> (i32, i32) {
    %c0_i32 = arith.constant 0 : i32
    %c0_i32_0 = arith.constant 0 : i32
    %c0_i32_1 = arith.constant 0 : i32
    return %c0_i32, %c0_i32_0 : i32, i32
  }
  func.func @transform_6(%arg0: i32) -> (i32, i32) {
    %c0_i32 = arith.constant 0 : i32
    %c0_i32_0 = arith.constant 0 : i32
    return %arg0, %c0_i32 : i32, i32
  }
}

</mosaic_0001>

<llo_original>
// kernel: tpu_custom_call.1
$region0: #{tpu_custom_call.1}
  #allocation0 [shape = 'u32[]', space=smem, size = 0x4, offset = 0x4, fixed_abs, tag = 'smem constant byte address 0x4 - core index']
  #allocation1 [shape = 'u32[72,128]{1,0:T(1,128)}', space=vmem, size = 0x9000, scoped, tag = 'internal scratch']
  %s0 = inlined_call_operand.hbm [shape: f32[8,128], index: 0, kind: input, shape index: {}]
  %s1 = inlined_call_operand.hbm [shape: f32[8,128], index: 1, kind: input, shape index: {}]
  %s2 = inlined_call_operand.hbm [shape: f32[128,128], index: 2, kind: input, shape index: {}]
  %s3 = inlined_call_operand.hbm [shape: f32[128,128], index: 3, kind: input, shape index: {}]
  %s4 = inlined_call_operand.vmem [shape: f32[1,128], index: 4, kind: input, shape index: {}]
  %s5 = inlined_call_operand.vmem [shape: f32[1,128], index: 5, kind: input, shape index: {}]
  %s6 = inlined_call_operand.hbm [shape: f32[8,128], index: 6, kind: output, shape index: {}]
  %s7 = sld [smem:[#allocation0]]
  $region50: #{tpu_custom_call.1} parent=0
    _
  %s9 = ssub.s32 1, %s7
  %s10 = scalar_select 0, %s9, %s7
  $region1: #{tpu_custom_call.1} parent=0
    #allocation2 [shape = 'u8[4096]{0}', space=vmem, size = 0x1000, scoped, tag = 'input window, operand 0, single buffered']
    #allocation3 [shape = 's32[1]{0}', space=sflag, size = 0x4, scoped, tag = 'scoped memory for tpu_custom_call.1']
    #allocation4 [shape = 's32[1]{0}', space=sflag, size = 0x4, scoped, tag = 'scoped memory for tpu_custom_call.1']
    #allocation5 [shape = 'u8[4096]{0}', space=vmem, size = 0x1000, scoped, tag = 'input window, operand 1, single buffered']
    #allocation6 [shape = 's32[1]{0}', space=sflag, size = 0x4, scoped, tag = 'scoped memory for tpu_custom_call.1']
    #allocation7 [shape = 'u8[65536]{0}', space=vmem, size = 0x10000, scoped, tag = 'input window, operand 2, single buffered']
    #allocation8 [shape = 'u8[65536]{0}', space=vmem, size = 0x10000, scoped, tag = 'input window, operand 3, single buffered']
    #allocation9 [shape = 's32[1]{0}', space=sflag, size = 0x4, scoped, tag = 'scoped memory for tpu_custom_call.1']
    #allocation10 [shape = 'u8[4096]{0}', space=vmem, size = 0x1000, scoped, tag = 'output window, operand 0, single buffered']
    %11 = vsyncpa [#allocation3], 0
    %12 = vsyncpa [#allocation6], 0
    %13 = vsyncpa [#allocation9], 0
    %14 = vsyncpa [#allocation4], 0
    // Predicated region
    $region2: #{tpu_custom_call.1} parent=1 // pred_check
      _
    $region3: #{tpu_custom_call.1} parent=1 // pred_check_branch
      %16 = sbr.rel (0) target = $region5
    $region4: #{tpu_custom_call.1} parent=1 // pred_region
      %18 = vsyncadd [#allocation3], 0
      %s20 = sshll.u32 %s0, 4
      %s21 = int_to_ptr.hbm [resolvable:$true] %s20
      %s22 = sshll.u32 [#allocation2], 4
      %s23 = int_to_ptr.vmem [resolvable:$true] %s22
      %25 = dma.hbm_to_vmem [thread:$0]  %s21, 128, %s23, [#allocation3]
    $region5: #{tpu_custom_call.1} parent=1 // pred_fallthru
      _
    // Predicated region
    $region6: #{tpu_custom_call.1} parent=1 // pred_check
      _
    $region7: #{tpu_custom_call.1} parent=1 // pred_check_branch
      %27 = sbr.rel (0) target = $region9
    $region8: #{tpu_custom_call.1} parent=1 // pred_region
      %29 = vsyncadd [#allocation6], 0
      %s31 = sshll.u32 %s1, 4
      %s32 = int_to_ptr.hbm [resolvable:$true] %s31
      %s33 = sshll.u32 [#allocation5], 4
      %s34 = int_to_ptr.vmem [resolvable:$true] %s33
      %36 = dma.hbm_to_vmem [thread:$0]  %s32, 128, %s34, [#allocation6]
    $region9: #{tpu_custom_call.1} parent=1 // pred_fallthru
      _
    // Predicated region
    $region10: #{tpu_custom_call.1} parent=1 // pred_check
      _
    $region11: #{tpu_custom_call.1} parent=1 // pred_check_branch
      %38 = sbr.rel (0) target = $region13
    $region12: #{tpu_custom_call.1} parent=1 // pred_region
      %40 = vsyncadd [#allocation6], 0
      %s41 = sshll.u32 %s2, 4
      %s42 = int_to_ptr.hbm [resolvable:$true] %s41
      %s43 = sshll.u32 [#allocation7], 4
      %s44 = int_to_ptr.vmem [resolvable:$true] %s43
      %49 = dma.hbm_to_vmem [thread:$0]  %s42, 2048, %s44, [#allocation6], 128, 128, 8
    $region13: #{tpu_custom_call.1} parent=1 // pred_fallthru
      _
    // Predicated region
    $region14: #{tpu_custom_call.1} parent=1 // pred_check
      _
    $region15: #{tpu_custom_call.1} parent=1 // pred_check_branch
      %51 = sbr.rel (0) target = $region17
    $region16: #{tpu_custom_call.1} parent=1 // pred_region
      %53 = vsyncadd [#allocation9], 0
      %s54 = sshll.u32 %s3, 4
      %s55 = int_to_ptr.hbm [resolvable:$true] %s54
      %s56 = sshll.u32 [#allocation8], 4
      %s57 = int_to_ptr.vmem [resolvable:$true] %s56
      %62 = dma.hbm_to_vmem [thread:$0]  %s55, 2048, %s57, [#allocation9], 128, 128, 8
    $region17: #{tpu_custom_call.1} parent=1 // pred_fallthru
      _
    // Predicated region
    $region18: #{tpu_custom_call.1} parent=1 // pred_check
      _
    $region19: #{tpu_custom_call.1} parent=1 // pred_check_branch
      %64 = sbr.rel (0) target = $region21
    $region20: #{tpu_custom_call.1} parent=1 // pred_region
      _
    $region21: #{tpu_custom_call.1} parent=1 // pred_fallthru
      _
    // Predicated region
    $region22: #{tpu_custom_call.1} parent=1 // pred_check
      _
    $region23: #{tpu_custom_call.1} parent=1 // pred_check_branch
      %66 = sbr.rel (0) target = $region25
    $region24: #{tpu_custom_call.1} parent=1 // pred_region
      _
    $region25: #{tpu_custom_call.1} parent=1 // pred_fallthru
      _
    // Predicated region
    $region26: #{tpu_custom_call.1} parent=1 // pred_check
      _
    $region27: #{tpu_custom_call.1} parent=1 // pred_check_branch
      %68 = sbr.rel (0) target = $region29
    $region28: #{tpu_custom_call.1} parent=1 // pred_region
      %70 = dma.done [#allocation3], 128
    $region29: #{tpu_custom_call.1} parent=1 // pred_fallthru
      _
    // Predicated region
    $region30: #{tpu_custom_call.1} parent=1 // pred_check
      _
    $region31: #{tpu_custom_call.1} parent=1 // pred_check_branch
      %72 = sbr.rel (0) target = $region33
    $region32: #{tpu_custom_call.1} parent=1 // pred_region
      %74 = dma.done [#allocation6], 128
    $region33: #{tpu_custom_call.1} parent=1 // pred_fallthru
      _
    // Predicated region
    $region34: #{tpu_custom_call.1} parent=1 // pred_check
      _
    $region35: #{tpu_custom_call.1} parent=1 // pred_check_branch
      %76 = sbr.rel (0) target = $region37
    $region36: #{tpu_custom_call.1} parent=1 // pred_region
      %78 = dma.done [#allocation6], 2048
    $region37: #{tpu_custom_call.1} parent=1 // pred_fallthru
      _
    // Predicated region
    $region38: #{tpu_custom_call.1} parent=1 // pred_check
      _
    $region39: #{tpu_custom_call.1} parent=1 // pred_check_branch
      %80 = sbr.rel (0) target = $region41
    $region40: #{tpu_custom_call.1} parent=1 // pred_region
      %82 = dma.done [#allocation9], 2048
    $region41: #{tpu_custom_call.1} parent=1 // pred_fallthru
      _
    %v83 = vld [vmem:[#allocation2] sm:$0xff]
    %v84 = vld [vmem:[#allocation7] sm:$0xff]
    %v85 = vld [vmem:[#allocation7 + $0x8] sm:$0xff]
    %v86 = vld [vmem:[#allocation7 + $0x10] sm:$0xff]
    %v87 = vld [vmem:[#allocation7 + $0x18] sm:$0xff]
    %v88 = vld [vmem:[#allocation7 + $0x20] sm:$0xff]
    %v89 = vld [vmem:[#allocation7 + $0x28] sm:$0xff]
    %v90 = vld [vmem:[#allocation7 + $0x30] sm:$0xff]
    %v91 = vld [vmem:[#allocation7 + $0x38] sm:$0xff]
    %v92 = vld [vmem:[#allocation7 + $0x40] sm:$0xff]
    %v93 = vld [vmem:[#allocation7 + $0x48] sm:$0xff]
    %v94 = vld [vmem:[#allocation7 + $0x50] sm:$0xff]
    %v95 = vld [vmem:[#allocation7 + $0x58] sm:$0xff]
    %v96 = vld [vmem:[#allocation7 + $0x60] sm:$0xff]
    %v97 = vld [vmem:[#allocation7 + $0x68] sm:$0xff]
    %v98 = vld [vmem:[#allocation7 + $0x70] sm:$0xff]
    %v99 = vld [vmem:[#allocation7 + $0x78] sm:$0xff]
    %100 = vmatpush.msra.mxu0 %v99
    %101 = vmatpush.msra.mxu0 %v98
    %102 = vmatpush.msra.mxu0 %v97
    %103 = vmatpush.msra.mxu0 %v96
    %104 = vmatpush.msra.mxu0 %v95
    %105 = vmatpush.msra.mxu0 %v94
    %106 = vmatpush.msra.mxu0 %v93
    %107 = vmatpush.msra.mxu0 %v92
    %108 = vmatpush.msra.mxu0 %v91
    %109 = vmatpush.msra.mxu0 %v90
    %110 = vmatpush.msra.mxu0 %v89
    %111 = vmatpush.msra.mxu0 %v88
    %112 = vmatpush.msra.mxu0 %v87
    %113 = vmatpush.msra.mxu0 %v86
    %114 = vmatpush.msra.mxu0 %v85
    %115 = vmatpush.msra.mxu0 %v84
    %116 = vmatmul.f32.gmra.mxu0 %v83
    %v117 = vpop.f32.mrf.mxu0
    %v118 = vadd.f32 0.0, %v117
    %119 = vdwg.mxu0
    %v120 = vtanh.pop %v118
    %v121 = vld [vmem:[#allocation5] sm:$0xff]
    %v122 = vld [vmem:[#allocation8] sm:$0xff]
    %v123 = vld [vmem:[#allocation8 + $0x8] sm:$0xff]
    %v124 = vld [vmem:[#allocation8 + $0x10] sm:$0xff]
    %v125 = vld [vmem:[#allocation8 + $0x18] sm:$0xff]
    %v126 = vld [vmem:[#allocation8 + $0x20] sm:$0xff]
    %v127 = vld [vmem:[#allocation8 + $0x28] sm:$0xff]
    %v128 = vld [vmem:[#allocation8 + $0x30] sm:$0xff]
    %v129 = vld [vmem:[#allocation8 + $0x38] sm:$0xff]
    %v130 = vld [vmem:[#allocation8 + $0x40] sm:$0xff]
    %v131 = vld [vmem:[#allocation8 + $0x48] sm:$0xff]
    %v132 = vld [vmem:[#allocation8 + $0x50] sm:$0xff]
    %v133 = vld [vmem:[#allocation8 + $0x58] sm:$0xff]
    %v134 = vld [vmem:[#allocation8 + $0x60] sm:$0xff]
    %v135 = vld [vmem:[#allocation8 + $0x68] sm:$0xff]
    %v136 = vld [vmem:[#allocation8 + $0x70] sm:$0xff]
    %v137 = vld [vmem:[#allocation8 + $0x78] sm:$0xff]
    %138 = vmatpush.msra.mxu0 %v137
    %139 = vmatpush.msra.mxu0 %v136
    %140 = vmatpush.msra.mxu0 %v135
    %141 = vmatpush.msra.mxu0 %v134
    %142 = vmatpush.msra.mxu0 %v133
    %143 = vmatpush.msra.mxu0 %v132
    %144 = vmatpush.msra.mxu0 %v131
    %145 = vmatpush.msra.mxu0 %v130
    %146 = vmatpush.msra.mxu0 %v129
    %147 = vmatpush.msra.mxu0 %v128
    %148 = vmatpush.msra.mxu0 %v127
    %149 = vmatpush.msra.mxu0 %v126
    %150 = vmatpush.msra.mxu0 %v125
    %151 = vmatpush.msra.mxu0 %v124
    %152 = vmatpush.msra.mxu0 %v123
    %153 = vmatpush.msra.mxu0 %v122
    %154 = vmatmul.f32.gmra.mxu0 %v121
    %v155 = vpop.f32.mrf.mxu0
    %v156 = vadd.f32 0.0, %v155
    %157 = vdwg.mxu0
    %v158 = vtanh.pop %v156
    %v159 = vld [vmem:[%s4] sm:$0x1]
    %v161 = vperm.slane %v159, 0
    %v163 = vmul.f32 %v120, %v161
    %164 = vadd.xlane.f32.xlu0 %v163
    %v165 = vpop.xlane.xlu0 %164
    %v166 = vld [vmem:[%s5] sm:$0x1]
    %v168 = vperm.slane %v166, 0
    %v170 = vmul.f32 %v158, %v168
    %171 = vadd.xlane.f32.xlu0 %v170
    %v172 = vpop.xlane.xlu0 %171
    %v173 = vadd.f32 %v165, %v172
    %v174 = vxor.u32 %v173, 2147483648
    %v175 = vmul.f32 %v174, 1.442695
    %v176 = vpow.pop %v175
    %v177 = vadd.f32 %v176, 1.0
    %v178 = vrcp.pop %v177
    %v179 = vmul.f32 %v177, %v178
    %v180 = vsub.f32 1.0, %v179
    %v181 = vmul.f32 %v178, %v180
    %v182 = vadd.f32 %v178, %v181
    %vm183 = vweird.f32 %v177
    %vm184 = vweird.f32 %v178
    %vm185 = vmor %vm183, %vm184
    %v186 = vsel %vm185, %v178, %v182
    %v187 = vand.u32 2147483647, %v177
    %vm188 = vcmp.eq.f32.partialorder %v187, 8.507059e+37
    %v189 = vand.u32 %v177, 2147483648
    %v190 = vor.u32 1.1754944e-38, %v189
    %v191 = vsel %vm188, %v190, %v186
    %v192 = vmul.f32 1.0, %v191
    %v193 = vsub.f32 %v120, %v158
    %v194 = vmul.f32 %v192, %v193
    %v195 = vadd.f32 %v158, %v194
    %196 = vst [vmem:[#allocation10] sm:$0xff] %v195
    // Predicated region
    $region42: #{tpu_custom_call.1} parent=1 // pred_check
      _
    $region43: #{tpu_custom_call.1} parent=1 // pred_check_branch
      %198 = sbr.rel (0) target = $region45
    $region44: #{tpu_custom_call.1} parent=1 // pred_region
      %200 = vsyncadd [#allocation4], 0
      %s202 = sshll.u32 [#allocation10], 4
      %s203 = int_to_ptr.vmem [resolvable:$true] %s202
      %s204 = sshll.u32 %s6, 4
      %s205 = int_to_ptr.hbm [resolvable:$true] %s204
      %207 = dma.vmem_to_hbm [thread:$0]  %s203, 128, %s205, [#allocation4]
    $region45: #{tpu_custom_call.1} parent=1 // pred_fallthru
      _
    // Predicated region
    $region46: #{tpu_custom_call.1} parent=1 // pred_check
      _
    $region47: #{tpu_custom_call.1} parent=1 // pred_check_branch
      %209 = sbr.rel (0) target = $region49
    $region48: #{tpu_custom_call.1} parent=1 // pred_region
      %211 = dma.done [#allocation4], 128
    $region49: #{tpu_custom_call.1} parent=1 // pred_fallthru
      _
    %212 = vsyncpa [#allocation3], 1
    %213 = vsyncpa [#allocation6], 1
    %214 = vsyncpa [#allocation9], 1
    %215 = vsyncpa [#allocation4], 1

</llo_original>
